<compile_context>
chip_gen: v7x
topology: tpu7x:2x2x1
jax: 0.10.0
libtpu: 0.0.40
codegen_flags: <defaults>
</compile_context>

<pallas_src>
import functools
import math

import jax
import jax.numpy as jnp
from jax import lax
from jax.experimental import pallas as pl
from jax.experimental.pallas import tpu as pltpu


# ----------------------------------------------------------------------------
# Tiling helpers
# ----------------------------------------------------------------------------
def _pick_tile(dim, target, align=8):
    """Largest t <= target dividing dim with t % align == 0, else the full dim.

    A full-dim block always satisfies the TPU (8, 128) block constraint, but it
    can be large; the attention path additionally checks a VMEM budget.
    """
    if dim <= target:
        return dim
    t = (target // align) * align
    while t >= align:
        if dim % t == 0:
            return t
        t -= align
    return dim


def _tpu_vmem_bytes(default=64 * 1024 * 1024):
    """Physical VMEM capacity; conservative (v7x) fallback if unknown."""
    try:
        return int(pltpu.get_tpu_info().vmem_capacity_bytes)
    except Exception:  # pragma: no cover - conservative fallback
        return default


def _choose_attention_tiling(seq_len, head_dim, score_bytes, vmem_cap, target):
    """Pick the query tile so double-buffered blocks fit the VMEM budget."""
    # K + V blocks (bf16); revisited along the inner axis but 2x allocated.
    kv_bytes = 2 * 2 * seq_len * head_dim * 2

    def step_bytes(tq):
        # scores block + q block + out block, each double-buffered.
        return kv_bytes + 2 * tq * (seq_len * score_bytes + 2 * head_dim * 2)

    budget = int(vmem_cap * 0.55)  # headroom for compiler scratch / semaphores
    all_cands = sorted(
        {d for d in range(8, seq_len + 1, 8) if seq_len % d == 0} | {seq_len})
    cands = [d for d in all_cands if d <= max(8, target)] or [all_cands[0]]
    tq = None
    for d in reversed(cands):
        if step_bytes(d) <= budget:
            tq = d
            break
    if tq is None:
        tq = cands[0]
    if step_bytes(tq) > int(vmem_cap * 0.85):
        raise ValueError(
            f"attention tile tq={tq} for L={seq_len} needs "
            f"~{step_bytes(tq) / 2**20:.1f} MiB VMEM "
            f"(> ~{vmem_cap / 2**20:.0f} MiB available); pad the sequence "
            "length to a more divisible size or use scores_dtype=jnp.bfloat16.")
    vmem_limit = int(min(vmem_cap * 0.75,
                         max(32 * 1024 * 1024, step_bytes(tq) + (8 << 20))))
    return tq, vmem_limit


# ----------------------------------------------------------------------------
# Fused kqv projection: x (B, L, D) @ W (D, 3A)  ->  (B, 3H, L, hd) bf16
# (head split done in-kernel with static column slices; q pre-scaled.)
# ----------------------------------------------------------------------------
def _kqv_proj_kernel(x_ref, w_ref, o_ref, *, num_heads, head_dim, q_scale):
    x = x_ref[0].astype(jnp.bfloat16)                       # (tm, D)
    y = jnp.dot(x, w_ref[...], preferred_element_type=jnp.float32)  # (tm, 3A)
    hd = head_dim
    for c in range(3 * num_heads):                          # static, chunk order k|q|v
        blk = y[:, c * hd:(c + 1) * hd]
        if num_heads <= c < 2 * num_heads:
            blk = blk * q_scale          # fold 1/sqrt(dk) into q before bf16 cast
        o_ref[0, c] = blk.astype(o_ref.dtype)


def pallas_kqv_proj(x, w_kqv_bf16, num_heads, head_dim, q_scale, *, row_tile=256):
    B, L, D = x.shape
    A3 = w_kqv_bf16.shape[1]
    assert A3 == 3 * num_heads * head_dim
    tm = _pick_tile(L, row_tile)
    grid = (B, L // tm)
    kernel = functools.partial(_kqv_proj_kernel, num_heads=num_heads,
                               head_dim=head_dim, q_scale=q_scale)
    return pl.pallas_call(
        kernel,
        grid=grid,
        out_shape=jax.ShapeDtypeStruct((B, 3 * num_heads, L, head_dim),
                                       jnp.bfloat16),
        in_specs=[pl.BlockSpec((1, tm, D), lambda b, i: (b, i, 0)),
                  pl.BlockSpec((D, A3), lambda b, i: (0, 0))],
        out_specs=pl.BlockSpec((1, 3 * num_heads, tm, head_dim),
                               lambda b, i: (b, 0, i, 0)),
        compiler_params=pltpu.CompilerParams(
            dimension_semantics=("parallel", "parallel")),
    )(x, w_kqv_bf16)


# ----------------------------------------------------------------------------
# Attention kernel: grid (B, H, L//tq), one head / query-tile per step.
# ----------------------------------------------------------------------------
def _mha_kernel(*refs, has_mask):
    if has_mask:
        q_ref, k_ref, v_ref, m_ref, o_ref, s_ref = refs
    else:
        q_ref, k_ref, v_ref, o_ref, s_ref = refs

    q = q_ref[0, 0]                      # (tq, hd) bf16, already 1/sqrt(dk)-scaled
    k = k_ref[0, 0]                      # (L,  hd) bf16
    v = v_ref[0, 0]                      # (L,  hd) bf16

    # scores = q @ k^T : contract the last (lane) dims, no XLU transpose,
    # f32 accumulation on the MXU.
    s = lax.dot_general(q, k, (((1,), (1,)), ((), ())),
                        preferred_element_type=jnp.float32)          # (tq, L)
    if has_mask:
        # (1, L) or (tq, L); broadcasts over query rows when needed.
        s = s + (1.0 - m_ref[0].astype(jnp.float32)) * (-100000.0)

    # Numerically-stable softmax.  Exact normalization: the probabilities are
    # returned to the caller, so no approx reciprocal here.
    s = s - jnp.max(s, axis=-1, keepdims=True)
    e = jnp.exp(s)
    p = e / jnp.sum(e, axis=-1, keepdims=True)
    # TODO(synk): dropout on p only applies in training mode (eval = identity).

    s_ref[0, 0] = p.astype(s_ref.dtype)
    o_ref[0, 0] = lax.dot_general(
        p.astype(jnp.bfloat16), v, (((1,), (0,)), ((), ())),
        preferred_element_type=jnp.float32).astype(o_ref.dtype)


def pallas_attention(kqv, num_heads, head_dim, mask=None, *,
                     scores_dtype=jnp.float32, q_tile_target=512):
    """kqv: (B, 3H, L, hd) bf16 head-major buffer (chunk order k|q|v).
    mask: None, (B, 1, L) or (B, L, L) with 1 = keep / 0 = mask.
    Returns (out (B, H, L, hd) bf16, scores (B, H, L, L) scores_dtype)."""
    B, C, L, hd = kqv.shape
    H = num_heads
    assert C == 3 * H and hd == head_dim

    score_bytes = jnp.dtype(scores_dtype).itemsize
    tq, vmem_limit = _choose_attention_tiling(
        L, hd, score_bytes, _tpu_vmem_bytes(), q_tile_target)
    nq = L // tq

    q_spec = pl.BlockSpec((1, 1, tq, hd), lambda b, h, i: (b, H + h, i, 0))
    k_spec = pl.BlockSpec((1, 1, L, hd), lambda b, h, i: (b, h, 0, 0))
    v_spec = pl.BlockSpec((1, 1, L, hd), lambda b, h, i: (b, 2 * H + h, 0, 0))
    o_spec = pl.BlockSpec((1, 1, tq, hd), lambda b, h, i: (b, h, i, 0))
    s_spec = pl.BlockSpec((1, 1, tq, L), lambda b, h, i: (b, h, i, 0))

    in_specs = [q_spec, k_spec, v_spec]
    inputs = [kqv, kqv, kqv]
    has_mask = mask is not None
    if has_mask:
        mask = mask.astype(jnp.float32)
        if mask.shape[1] == 1:   # pad mask, broadcast over query rows in-kernel
            m_spec = pl.BlockSpec((1, 1, L), lambda b, h, i: (b, 0, 0))
        else:                    # full (B, M, L) mask
            m_spec = pl.BlockSpec((1, tq, L), lambda b, h, i: (b, i, 0))
        in_specs.append(m_spec)
        inputs.append(mask)

    kernel = functools.partial(_mha_kernel, has_mask=has_mask)
    out, scores = pl.pallas_call(
        kernel,
        grid=(B, H, nq),
        out_shape=(jax.ShapeDtypeStruct((B, H, L, hd), jnp.bfloat16),
                   jax.ShapeDtypeStruct((B, H, L, L), scores_dtype)),
        in_specs=in_specs,
        out_specs=(o_spec, s_spec),
        compiler_params=pltpu.CompilerParams(
            dimension_semantics=("parallel", "parallel", "parallel"),
            vmem_limit_bytes=vmem_limit),
    )(*inputs)
    return out, scores


# ----------------------------------------------------------------------------
# Output projection: (B, H, L, hd) -> (B, L, A), merge_heads fused into the
# contraction (per-head weight slabs), lane-dense (tm, A) output stores.
# ----------------------------------------------------------------------------
def _out_proj_kernel(a_ref, w_ref, b_ref, o_ref, *, num_heads):
    acc = jnp.dot(a_ref[0, 0], w_ref[0], preferred_element_type=jnp.float32)
    for h in range(1, num_heads):
        acc += jnp.dot(a_ref[0, h], w_ref[h], preferred_element_type=jnp.float32)
    o_ref[0] = (acc + b_ref[...]).astype(o_ref.dtype)


def pallas_out_proj(att, w_out_heads, b_out_2d, *, out_dtype=jnp.float32,
                    row_tile=256):
    B, H, L, hd = att.shape
    A = w_out_heads.shape[-1]
    tm = _pick_tile(L, row_tile)
    grid = (B, L // tm)
    kernel = functools.partial(_out_proj_kernel, num_heads=H)
    return pl.pallas_call(
        kernel,
        grid=grid,
        out_shape=jax.ShapeDtypeStruct((B, L, A), out_dtype),
        in_specs=[pl.BlockSpec((1, H, tm, hd), lambda b, i: (b, 0, i, 0)),
                  pl.BlockSpec((H, hd, A), lambda b, i: (0, 0, 0)),
                  pl.BlockSpec((1, A), lambda b, i: (0, 0))],
        out_specs=pl.BlockSpec((1, tm, A), lambda b, i: (b, i, 0)),
        compiler_params=pltpu.CompilerParams(
            dimension_semantics=("parallel", "parallel")),
    )(att, w_out_heads, b_out_2d)


# ----------------------------------------------------------------------------
# Module wrapper
# ----------------------------------------------------------------------------
def init_params(key, input_size, attention_size):
    """Deterministic xavier_normal weights / zero bias (reset_parameters)."""
    k1, k2 = jax.random.split(key)
    std_kqv = math.sqrt(2.0 / (input_size + 3 * attention_size))
    w_kqv = (jax.random.normal(k1, (3 * attention_size, input_size),
                               jnp.float32) * std_kqv).T      # (In, 3A): x @ W
    std_out = math.sqrt(2.0 / (attention_size + attention_size))
    w_out = (jax.random.normal(k2, (attention_size, attention_size),
                               jnp.float32) * std_out).T
    b_out = jnp.zeros((attention_size,), jnp.float32)
    return {"w_kqv": w_kqv, "w_out": w_out, "b_out": b_out}


def multihead_self_attention(x, params, num_heads, attention_mask=None,
                             scores_dtype=jnp.float32):
    """Forward pass of MultiheadSelfAttention (eval mode, no nystrom, no conv).

    q/k/v and both matmul weight operands are bf16 (f32 accumulation); expect
    ~1e-3..1e-2 relative error vs. an all-f32 reference.  scores_dtype=bf16
    halves the O(B*H*L^2) scores writeback (recommended on v5e); the default
    f32 keeps the returned probabilities at reference precision.
    """
    B, L, D = x.shape
    A = params["w_out"].shape[1]
    hd = A // num_heads
    dk = hd

    # One-time weight prep (bf16 matmul operands, per-head output weight).
    w_kqv = params["w_kqv"].astype(jnp.bfloat16)                       # (D, 3A)
    w_out = params["w_out"].astype(jnp.bfloat16).reshape(num_heads, hd, A)
    b_out = params["b_out"].astype(jnp.float32).reshape(1, A)

    # Fused kqv projection -> head-major (B, 3H, L, hd) bf16, q pre-scaled.
    kqv = pallas_kqv_proj(x, w_kqv, num_heads, hd, 1.0 / math.sqrt(dk))

    mask = None
    if attention_mask is not None:
        m = attention_mask.astype(jnp.float32)
        if m.ndim == 2:            # [B, L] pad mask -> [B, 1, L]
            m = m[:, None, :]
        mask = m                   # (B, 1, L) or (B, M(=L), L); head broadcast
                                   # happens via the grid (no BxHxLxL array).

    att, scores = pallas_attention(kqv, num_heads, hd, mask=mask,
                                   scores_dtype=scores_dtype)

    # Output projection with fused head merge (lane-dense (B, L, A) stores).
    out = pallas_out_proj(att, w_out, b_out, out_dtype=x.dtype)
    return out, scores


# ----------------------------------------------------------------------------
# Pure-JAX reference (mirrors the PyTorch module in f32) + demo
# ----------------------------------------------------------------------------
def _reference_forward(x, params, num_heads, attention_mask=None):
    B, L, _ = x.shape
    A = params["w_out"].shape[1]
    hd = A // num_heads
    kqv = x @ params["w_kqv"]
    k, q, v = jnp.split(kqv, 3, axis=-1)

    def split(t):
        return t.reshape(B, L, num_heads, hd).transpose(0, 2, 1, 3)

    k, q, v = split(k), split(q), split(v)
    s = jnp.einsum("bhmd,bhld->bhml", q, k) / math.sqrt(hd)
    if attention_mask is not None:
        m = attention_mask.astype(jnp.float32)
        if m.ndim == 2:
            m = m[:, None, :]
        s = s + (1.0 - m[:, None, :, :]) * (-100000.0)
    p = jax.nn.softmax(s, axis=-1)
    out = jnp.einsum("bhml,bhld->bhmd", p, v)
    out = out.transpose(0, 2, 1, 3).reshape(B, L, A)
    return out @ params["w_out"] + params["b_out"], p


if __name__ == "__main__":
    B, L = 2, 8
    attention_size = 32
    num_heads = 4
    input_size = 32

    key = jax.random.PRNGKey(0)
    k_param, k_x = jax.random.split(key)
    params = init_params(k_param, input_size, attention_size)
    x = jax.random.normal(k_x, (B, L, input_size), jnp.float32)

    # No-mask path.
    out, scores = multihead_self_attention(x, params, num_heads)
    jax.block_until_ready((out, scores))
    assert out.shape == (B, L, attention_size)
    assert scores.shape == (B, num_heads, L, L)
    ref_out, ref_scores = _reference_forward(x, params, num_heads)
    assert float(jnp.max(jnp.abs(out - ref_out))) < 8e-2
    assert float(jnp.max(jnp.abs(scores - ref_scores))) < 5e-2

    # Pad-mask path ([B, L] mask, last two key positions masked out).
    pad_mask = jnp.concatenate(
        [jnp.ones((B, L - 2), jnp.float32), jnp.zeros((B, 2), jnp.float32)],
        axis=-1)
    out_m, scores_m = multihead_self_attention(
        x, params, num_heads, attention_mask=pad_mask)
    jax.block_until_ready((out_m, scores_m))
    assert out_m.shape == (B, L, attention_size)
    assert scores_m.shape == (B, num_heads, L, L)
    ref_out_m, ref_scores_m = _reference_forward(
        x, params, num_heads, attention_mask=pad_mask)
    assert float(jnp.max(jnp.abs(out_m - ref_out_m))) < 8e-2
    assert float(jnp.max(jnp.abs(scores_m - ref_scores_m))) < 5e-2

    print("KERNEL_OK")
</pallas_src>

<mosaic_0001>
module attributes {stable_mosaic.version = 11 : i64} {
  func.func @_kqv_proj_kernel(%arg0: i32, %arg1: i32, %arg2: memref<1x8x32xf32, #tpu.memory_space<vmem>>, %arg3: memref<32x96xbf16, #tpu.memory_space<vmem>>, %arg4: memref<1x12x8x8xbf16, #tpu.memory_space<vmem>>) attributes {dimension_semantics = [#tpu.dimension_semantics<parallel>, #tpu.dimension_semantics<parallel>], iteration_bounds = array<i64: 2, 1>, scalar_prefetch = 0 : i64, scratch_operands = 0 : i64, tpu.core_type = #tpu.core_type<tc>, window_params = [{transform_indices = @transform_0, window_bounds = array<i64: 1, 8, 32>}, {pipeline_mode = #tpu.pipeline_mode<synchronous>, transform_indices = @transform_1, window_bounds = array<i64: 32, 96>}, {transform_indices = @transform_2, window_bounds = array<i64: 1, 12, 8, 8>}]} {
    %c0 = arith.constant 0 : index
    %c0_0 = arith.constant 0 : index
    %c0_1 = arith.constant 0 : index
    %0 = vector.load %arg2[%c0, %c0_0, %c0_1] : memref<1x8x32xf32, #tpu.memory_space<vmem>>, vector<1x8x32xf32>
    %1 = vector.shape_cast %0 : vector<1x8x32xf32> to vector<8x32xf32>
    %2 = arith.truncf %1 : vector<8x32xf32> to vector<8x32xbf16>
    %c0_2 = arith.constant 0 : index
    %c0_3 = arith.constant 0 : index
    %3 = vector.load %arg3[%c0_2, %c0_3] : memref<32x96xbf16, #tpu.memory_space<vmem>>, vector<32x96xbf16>
    %cst = arith.constant dense<0.000000e+00> : vector<8x96xf32>
    %4 = tpu.matmul %2, %3, %cst {dimension_numbers = #tpu.dot_dimension_numbers<[1], [0], [0], [1], [0, 0, 1, 1], [], []>} : vector<8x32xbf16>, vector<32x96xbf16>, vector<8x96xf32> -> vector<8x96xf32>
    %5 = vector.extract_strided_slice %4 {offsets = [0, 0], sizes = [8, 8], strides = [1, 1]} : vector<8x96xf32> to vector<8x8xf32>
    %6 = arith.truncf %5 : vector<8x8xf32> to vector<8x8xbf16>
    %c0_4 = arith.constant 0 : index
    %c0_5 = arith.constant 0 : index
    %c0_6 = arith.constant 0 : index
    %c0_7 = arith.constant 0 : index
    %7 = vector.load %arg4[%c0_4, %c0_5, %c0_6, %c0_7] : memref<1x12x8x8xbf16, #tpu.memory_space<vmem>>, vector<1x1x8x8xbf16>
    %8 = vector.shape_cast %7 : vector<1x1x8x8xbf16> to vector<8x8xbf16>
    %9 = vector.shape_cast %6 : vector<8x8xbf16> to vector<1x1x8x8xbf16>
    tpu.vector_store %arg4[%c0_4, %c0_5, %c0_6, %c0_7], %9 {strides = array<i32>} : memref<1x12x8x8xbf16, #tpu.memory_space<vmem>>, vector<1x1x8x8xbf16>,
    %10 = vector.extract_strided_slice %4 {offsets = [0, 8], sizes = [8, 8], strides = [1, 1]} : vector<8x96xf32> to vector<8x8xf32>
    %11 = arith.truncf %10 : vector<8x8xf32> to vector<8x8xbf16>
    %c0_8 = arith.constant 0 : index
    %c1 = arith.constant 1 : index
    %c0_9 = arith.constant 0 : index
    %c0_10 = arith.constant 0 : index
    %12 = vector.load %arg4[%c0_8, %c1, %c0_9, %c0_10] : memref<1x12x8x8xbf16, #tpu.memory_space<vmem>>, vector<1x1x8x8xbf16>
    %13 = vector.shape_cast %12 : vector<1x1x8x8xbf16> to vector<8x8xbf16>
    %14 = vector.shape_cast %11 : vector<8x8xbf16> to vector<1x1x8x8xbf16>
    tpu.vector_store %arg4[%c0_8, %c1, %c0_9, %c0_10], %14 {strides = array<i32>} : memref<1x12x8x8xbf16, #tpu.memory_space<vmem>>, vector<1x1x8x8xbf16>,
    %15 = vector.extract_strided_slice %4 {offsets = [0, 16], sizes = [8, 8], strides = [1, 1]} : vector<8x96xf32> to vector<8x8xf32>
    %16 = arith.truncf %15 : vector<8x8xf32> to vector<8x8xbf16>
    %c0_11 = arith.constant 0 : index
    %c2 = arith.constant 2 : index
    %c0_12 = arith.constant 0 : index
    %c0_13 = arith.constant 0 : index
    %17 = vector.load %arg4[%c0_11, %c2, %c0_12, %c0_13] : memref<1x12x8x8xbf16, #tpu.memory_space<vmem>>, vector<1x1x8x8xbf16>
    %18 = vector.shape_cast %17 : vector<1x1x8x8xbf16> to vector<8x8xbf16>
    %19 = vector.shape_cast %16 : vector<8x8xbf16> to vector<1x1x8x8xbf16>
    tpu.vector_store %arg4[%c0_11, %c2, %c0_12, %c0_13], %19 {strides = array<i32>} : memref<1x12x8x8xbf16, #tpu.memory_space<vmem>>, vector<1x1x8x8xbf16>,
    %20 = vector.extract_strided_slice %4 {offsets = [0, 24], sizes = [8, 8], strides = [1, 1]} : vector<8x96xf32> to vector<8x8xf32>
    %21 = arith.truncf %20 : vector<8x8xf32> to vector<8x8xbf16>
    %c0_14 = arith.constant 0 : index
    %c3 = arith.constant 3 : index
    %c0_15 = arith.constant 0 : index
    %c0_16 = arith.constant 0 : index
    %22 = vector.load %arg4[%c0_14, %c3, %c0_15, %c0_16] : memref<1x12x8x8xbf16, #tpu.memory_space<vmem>>, vector<1x1x8x8xbf16>
    %23 = vector.shape_cast %22 : vector<1x1x8x8xbf16> to vector<8x8xbf16>
    %24 = vector.shape_cast %21 : vector<8x8xbf16> to vector<1x1x8x8xbf16>
    tpu.vector_store %arg4[%c0_14, %c3, %c0_15, %c0_16], %24 {strides = array<i32>} : memref<1x12x8x8xbf16, #tpu.memory_space<vmem>>, vector<1x1x8x8xbf16>,
    %25 = vector.extract_strided_slice %4 {offsets = [0, 32], sizes = [8, 8], strides = [1, 1]} : vector<8x96xf32> to vector<8x8xf32>
    %cst_17 = arith.constant 0.353553385 : f32
    %26 = vector.broadcast %cst_17 : f32 to vector<8x8xf32>
    %27 = arith.mulf %25, %26 : vector<8x8xf32>
    %28 = arith.truncf %27 : vector<8x8xf32> to vector<8x8xbf16>
    %c0_18 = arith.constant 0 : index
    %c4 = arith.constant 4 : index
    %c0_19 = arith.constant 0 : index
    %c0_20 = arith.constant 0 : index
    %29 = vector.load %arg4[%c0_18, %c4, %c0_19, %c0_20] : memref<1x12x8x8xbf16, #tpu.memory_space<vmem>>, vector<1x1x8x8xbf16>
    %30 = vector.shape_cast %29 : vector<1x1x8x8xbf16> to vector<8x8xbf16>
    %31 = vector.shape_cast %28 : vector<8x8xbf16> to vector<1x1x8x8xbf16>
    tpu.vector_store %arg4[%c0_18, %c4, %c0_19, %c0_20], %31 {strides = array<i32>} : memref<1x12x8x8xbf16, #tpu.memory_space<vmem>>, vector<1x1x8x8xbf16>,
    %32 = vector.extract_strided_slice %4 {offsets = [0, 40], sizes = [8, 8], strides = [1, 1]} : vector<8x96xf32> to vector<8x8xf32>
    %cst_21 = arith.constant 0.353553385 : f32
    %33 = vector.broadcast %cst_21 : f32 to vector<8x8xf32>
    %34 = arith.mulf %32, %33 : vector<8x8xf32>
    %35 = arith.truncf %34 : vector<8x8xf32> to vector<8x8xbf16>
    %c0_22 = arith.constant 0 : index
    %c5 = arith.constant 5 : index
    %c0_23 = arith.constant 0 : index
    %c0_24 = arith.constant 0 : index
    %36 = vector.load %arg4[%c0_22, %c5, %c0_23, %c0_24] : memref<1x12x8x8xbf16, #tpu.memory_space<vmem>>, vector<1x1x8x8xbf16>
    %37 = vector.shape_cast %36 : vector<1x1x8x8xbf16> to vector<8x8xbf16>
    %38 = vector.shape_cast %35 : vector<8x8xbf16> to vector<1x1x8x8xbf16>
    tpu.vector_store %arg4[%c0_22, %c5, %c0_23, %c0_24], %38 {strides = array<i32>} : memref<1x12x8x8xbf16, #tpu.memory_space<vmem>>, vector<1x1x8x8xbf16>,
    %39 = vector.extract_strided_slice %4 {offsets = [0, 48], sizes = [8, 8], strides = [1, 1]} : vector<8x96xf32> to vector<8x8xf32>
    %cst_25 = arith.constant 0.353553385 : f32
    %40 = vector.broadcast %cst_25 : f32 to vector<8x8xf32>
    %41 = arith.mulf %39, %40 : vector<8x8xf32>
    %42 = arith.truncf %41 : vector<8x8xf32> to vector<8x8xbf16>
    %c0_26 = arith.constant 0 : index
    %c6 = arith.constant 6 : index
    %c0_27 = arith.constant 0 : index
    %c0_28 = arith.constant 0 : index
    %43 = vector.load %arg4[%c0_26, %c6, %c0_27, %c0_28] : memref<1x12x8x8xbf16, #tpu.memory_space<vmem>>, vector<1x1x8x8xbf16>
    %44 = vector.shape_cast %43 : vector<1x1x8x8xbf16> to vector<8x8xbf16>
    %45 = vector.shape_cast %42 : vector<8x8xbf16> to vector<1x1x8x8xbf16>
    tpu.vector_store %arg4[%c0_26, %c6, %c0_27, %c0_28], %45 {strides = array<i32>} : memref<1x12x8x8xbf16, #tpu.memory_space<vmem>>, vector<1x1x8x8xbf16>,
    %46 = vector.extract_strided_slice %4 {offsets = [0, 56], sizes = [8, 8], strides = [1, 1]} : vector<8x96xf32> to vector<8x8xf32>
    %cst_29 = arith.constant 0.353553385 : f32
    %47 = vector.broadcast %cst_29 : f32 to vector<8x8xf32>
    %48 = arith.mulf %46, %47 : vector<8x8xf32>
    %49 = arith.truncf %48 : vector<8x8xf32> to vector<8x8xbf16>
    %c0_30 = arith.constant 0 : index
    %c7 = arith.constant 7 : index
    %c0_31 = arith.constant 0 : index
    %c0_32 = arith.constant 0 : index
    %50 = vector.load %arg4[%c0_30, %c7, %c0_31, %c0_32] : memref<1x12x8x8xbf16, #tpu.memory_space<vmem>>, vector<1x1x8x8xbf16>
    %51 = vector.shape_cast %50 : vector<1x1x8x8xbf16> to vector<8x8xbf16>
    %52 = vector.shape_cast %49 : vector<8x8xbf16> to vector<1x1x8x8xbf16>
    tpu.vector_store %arg4[%c0_30, %c7, %c0_31, %c0_32], %52 {strides = array<i32>} : memref<1x12x8x8xbf16, #tpu.memory_space<vmem>>, vector<1x1x8x8xbf16>,
    %53 = vector.extract_strided_slice %4 {offsets = [0, 64], sizes = [8, 8], strides = [1, 1]} : vector<8x96xf32> to vector<8x8xf32>
    %54 = arith.truncf %53 : vector<8x8xf32> to vector<8x8xbf16>
    %c0_33 = arith.constant 0 : index
    %c8 = arith.constant 8 : index
    %c0_34 = arith.constant 0 : index
    %c0_35 = arith.constant 0 : index
    %55 = vector.load %arg4[%c0_33, %c8, %c0_34, %c0_35] : memref<1x12x8x8xbf16, #tpu.memory_space<vmem>>, vector<1x1x8x8xbf16>
    %56 = vector.shape_cast %55 : vector<1x1x8x8xbf16> to vector<8x8xbf16>
    %57 = vector.shape_cast %54 : vector<8x8xbf16> to vector<1x1x8x8xbf16>
    tpu.vector_store %arg4[%c0_33, %c8, %c0_34, %c0_35], %57 {strides = array<i32>} : memref<1x12x8x8xbf16, #tpu.memory_space<vmem>>, vector<1x1x8x8xbf16>,
    %58 = vector.extract_strided_slice %4 {offsets = [0, 72], sizes = [8, 8], strides = [1, 1]} : vector<8x96xf32> to vector<8x8xf32>
    %59 = arith.truncf %58 : vector<8x8xf32> to vector<8x8xbf16>
    %c0_36 = arith.constant 0 : index
    %c9 = arith.constant 9 : index
    %c0_37 = arith.constant 0 : index
    %c0_38 = arith.constant 0 : index
    %60 = vector.load %arg4[%c0_36, %c9, %c0_37, %c0_38] : memref<1x12x8x8xbf16, #tpu.memory_space<vmem>>, vector<1x1x8x8xbf16>
    %61 = vector.shape_cast %60 : vector<1x1x8x8xbf16> to vector<8x8xbf16>
    %62 = vector.shape_cast %59 : vector<8x8xbf16> to vector<1x1x8x8xbf16>
    tpu.vector_store %arg4[%c0_36, %c9, %c0_37, %c0_38], %62 {strides = array<i32>} : memref<1x12x8x8xbf16, #tpu.memory_space<vmem>>, vector<1x1x8x8xbf16>,
    %63 = vector.extract_strided_slice %4 {offsets = [0, 80], sizes = [8, 8], strides = [1, 1]} : vector<8x96xf32> to vector<8x8xf32>
    %64 = arith.truncf %63 : vector<8x8xf32> to vector<8x8xbf16>
    %c0_39 = arith.constant 0 : index
    %c10 = arith.constant 10 : index
    %c0_40 = arith.constant 0 : index
    %c0_41 = arith.constant 0 : index
    %65 = vector.load %arg4[%c0_39, %c10, %c0_40, %c0_41] : memref<1x12x8x8xbf16, #tpu.memory_space<vmem>>, vector<1x1x8x8xbf16>
    %66 = vector.shape_cast %65 : vector<1x1x8x8xbf16> to vector<8x8xbf16>
    %67 = vector.shape_cast %64 : vector<8x8xbf16> to vector<1x1x8x8xbf16>
    tpu.vector_store %arg4[%c0_39, %c10, %c0_40, %c0_41], %67 {strides = array<i32>} : memref<1x12x8x8xbf16, #tpu.memory_space<vmem>>, vector<1x1x8x8xbf16>,
    %68 = vector.extract_strided_slice %4 {offsets = [0, 88], sizes = [8, 8], strides = [1, 1]} : vector<8x96xf32> to vector<8x8xf32>
    %69 = arith.truncf %68 : vector<8x8xf32> to vector<8x8xbf16>
    %c0_42 = arith.constant 0 : index
    %c11 = arith.constant 11 : index
    %c0_43 = arith.constant 0 : index
    %c0_44 = arith.constant 0 : index
    %70 = vector.load %arg4[%c0_42, %c11, %c0_43, %c0_44] : memref<1x12x8x8xbf16, #tpu.memory_space<vmem>>, vector<1x1x8x8xbf16>
    %71 = vector.shape_cast %70 : vector<1x1x8x8xbf16> to vector<8x8xbf16>
    %72 = vector.shape_cast %69 : vector<8x8xbf16> to vector<1x1x8x8xbf16>
    tpu.vector_store %arg4[%c0_42, %c11, %c0_43, %c0_44], %72 {strides = array<i32>} : memref<1x12x8x8xbf16, #tpu.memory_space<vmem>>, vector<1x1x8x8xbf16>,
    return
  }
  func.func @transform_0(%arg0: i32, %arg1: i32) -> (i32, i32, i32) {
    %c0_i32 = arith.constant 0 : i32
    %c0_i32_0 = arith.constant 0 : i32
    return %arg0, %arg1, %c0_i32 : i32, i32, i32
  }
  func.func @transform_1(%arg0: i32, %arg1: i32) -> (i32, i32) {
    %c0_i32 = arith.constant 0 : i32
    %c0_i32_0 = arith.constant 0 : i32
    %c0_i32_1 = arith.constant 0 : i32
    return %c0_i32, %c0_i32_0 : i32, i32
  }
  func.func @transform_2(%arg0: i32, %arg1: i32) -> (i32, i32, i32, i32) {
    %c0_i32 = arith.constant 0 : i32
    %c0_i32_0 = arith.constant 0 : i32
    %c0_i32_1 = arith.constant 0 : i32
    return %arg0, %c0_i32, %arg1, %c0_i32_0 : i32, i32, i32, i32
  }
}

</mosaic_0001>

<llo_original>
// kernel: tpu_custom_call.1
$region0: #{tpu_custom_call.1}
  #allocation0 [shape = 'u32[]', space=smem, size = 0x4, offset = 0x4, fixed_abs, tag = 'smem constant byte address 0x4 - core index']
  #allocation1 [shape = 'u32[144,128]{1,0:T(1,128)}', space=vmem, size = 0x12000, scoped, tag = 'internal scratch']
  %s0 = inlined_call_operand.hbm [shape: f32[2,8,32], index: 0, kind: input, shape index: {}]
  %s1 = inlined_call_operand.hbm [shape: bf16[32,96], index: 1, kind: input, shape index: {}]
  %s2 = inlined_call_operand.vmem [shape: bf16[2,12,8,8], index: 2, kind: output, shape index: {}]
  %s3 = sld [smem:[#allocation0]]
  $region49: #{tpu_custom_call.1} parent=0
    _
  %s5 = ssub.s32 1, %s3
  %s6 = scalar_select 0, %s5, %s3
  $region1: #{tpu_custom_call.1} parent=0
    #allocation2 [shape = 'u8[8192]{0}', space=vmem, size = 0x2000, scoped, tag = 'input window, operand 0']
    #allocation3 [shape = 's32[2]{0}', space=sflag, size = 0x8, scoped, tag = 'scoped memory for tpu_custom_call.1']
    #allocation4 [shape = 'u8[8192]{0}', space=vmem, size = 0x2000, scoped, tag = 'input window, operand 1, single buffered']
    #allocation5 [shape = 's32[1]{0}', space=sflag, size = 0x4, scoped, tag = 'scoped memory for tpu_custom_call.1']
    %7 = vsyncpa [#allocation3], 0
    %s8 = scalar_lea.sflag [#allocation3], 1
    %9 = vsyncpa %s8, 0
    %10 = vsyncpa [#allocation5], 0
    loop: start=0, step=1, limit=4
    $region2: #{tpu_custom_call.1} parent=1 // loop_pre_header
      _
    $region3: #{tpu_custom_call.1} parent=1 // loop_header
      %s12 = sphi 0, %s16
      %p13 = scmp.ge.s32.totalorder %s12, 4
      %s19 = sphi 0, %s31
      %s20 = sphi 0, %s27
      %s21 = sphi 0, %s19
      %s22 = sphi 0, %s20
      %s23 = sphi 0, %s21
      %s24 = sphi 0, %s22
      %s36 = sphi 0, %s38
      %s39 = sphi 0, %s36
      %s40 = sphi 0, %s39
      %s56 = sphi 0, %s40
      %s60 = sphi 0, %s60
      %s62 = sphi 0, %s60
      %s63 = sphi 0, %s62
      %s77 = sphi 0, %s63
      %s85 = sphi 0, %s87
      %s88 = sphi 0, %s85
      %s89 = sphi 0, %s88
      %s105 = sphi 0, %s89
    $region4: #{tpu_custom_call.1} parent=1 // loop_header_branch
      %15 = sbr.rel (%p13) target = $region8
    $region5: #{tpu_custom_call.1} parent=1 // loop_body
      %s17 = ssub.s32 %s12, 1
      %s18 = ssub.s32 %s12, 2
      %s25 = sadd.s32 1, %s20
      %p26 = scmp.ge.s32.totalorder %s25, 1
      %s27 = scalar_select %p26, 0, %s25
      %s28 = sadd.s32 1, %s19
      %s29 = scalar_select %p26, %s28, %s19
      %p30 = scmp.ge.s32.totalorder %s29, 2
      %s31 = scalar_select %p30, 0, %s29
      %s32 = ssub.s32 %s19, %s31
      %s33 = ssub.s32 %s20, %s27
      %s34 = sor.u32 %s32, %s33
      %p35 = scmp.eq.s32.totalorder %s34, 0
      %s37 = sadd.s32 %s36, 1
      %s38 = scalar_select %p35, %s36, %s37
      %p41 = pneg %p35
      %p42 = scmp.eq.s32.totalorder %s12, 1
      %p43 = por %p41, %p42
      %p44 = scmp.ne.s32.totalorder %s36, %s39
      %p45 = scmp.eq.s32.totalorder %s12, 0
      %p46 = por %p44, %p45
      %p47 = scmp.ne.s32.totalorder %s36, %s39
      %p48 = scmp.eq.s32.totalorder %s17, 1
      %p49 = por %p47, %p48
      %p50 = scmp.ne.s32.totalorder %s39, %s40
      %p51 = scmp.eq.s32.totalorder %s17, 0
      %p52 = por %p50, %p51
      %p53 = scmp.ne.s32.totalorder %s39, %s40
      %p54 = scmp.eq.s32.totalorder %s18, 1
      %p55 = por %p53, %p54
      %p57 = scmp.ne.s32.totalorder %s40, %s56
      %p58 = scmp.eq.s32.totalorder %s18, 0
      %p59 = por %p57, %p58
      %s61 = sadd.s32 %s60, 1
      %p64 = scmp.eq.s32.totalorder %s12, 1
      %p65 = scmp.ne.s32.totalorder %s60, %s62
      %p66 = scmp.eq.s32.totalorder %s12, 0
      %p67 = por %p65, %p66
      %p68 = scmp.ne.s32.totalorder %s60, %s62
      %p69 = scmp.eq.s32.totalorder %s17, 1
      %p70 = por %p68, %p69
      %p71 = scmp.ne.s32.totalorder %s62, %s63
      %p72 = scmp.eq.s32.totalorder %s17, 0
      %p73 = por %p71, %p72
      %p74 = scmp.ne.s32.totalorder %s62, %s63
      %p75 = scmp.eq.s32.totalorder %s18, 1
      %p76 = por %p74, %p75
      %p78 = scmp.ne.s32.totalorder %s63, %s77
      %p79 = scmp.eq.s32.totalorder %s18, 0
      %p80 = por %p78, %p79
      %s81 = ssub.s32 %s19, %s31
      %s82 = ssub.s32 %s20, %s27
      %s83 = sor.u32 %s81, %s82
      %p84 = scmp.eq.s32.totalorder %s83, 0
      %s86 = sadd.s32 %s85, 1
      %s87 = scalar_select %p84, %s85, %s86
      %p90 = pneg %p84
      %p91 = scmp.eq.s32.totalorder %s12, 1
      %p92 = por %p90, %p91
      %p93 = scmp.ne.s32.totalorder %s85, %s88
      %p94 = scmp.eq.s32.totalorder %s12, 0
      %p95 = por %p93, %p94
      %p96 = scmp.ne.s32.totalorder %s85, %s88
      %p97 = scmp.eq.s32.totalorder %s17, 1
      %p98 = por %p96, %p97
      %p99 = scmp.ne.s32.totalorder %s88, %s89
      %p100 = scmp.eq.s32.totalorder %s17, 0
      %p101 = por %p99, %p100
      %p102 = scmp.ne.s32.totalorder %s88, %s89
      %p103 = scmp.eq.s32.totalorder %s18, 1
      %p104 = por %p102, %p103
      %p106 = scmp.ne.s32.totalorder %s89, %s105
      %p107 = scmp.eq.s32.totalorder %s18, 0
      %p108 = por %p106, %p107
      %p109 = scmp.le.s32.totalorder 1, %s12
      %p110 = scmp.lt.s32.totalorder %s12, 3
      %p111 = pnand %p109, %p110
      %p112 = pneg %p111
      // Predicated region
      $region9: #{tpu_custom_call.1} parent=5 // pred_check
        _
      $region10: #{tpu_custom_call.1} parent=5 // pred_check_branch
        %114 = sbr.rel (%p111) target = $region12
      $region11: #{tpu_custom_call.1} parent=5 // pred_region
        %s115 = ssub.s32 %s12, 1
        // Predicated region
        $region13: #{tpu_custom_call.1} parent=11 // pred_check
          %p116 = pneg %p73
        $region14: #{tpu_custom_call.1} parent=11 // pred_check_branch
          %118 = sbr.rel (%p116) target = $region16
        $region15: #{tpu_custom_call.1} parent=11 // pred_region
          %s120 = ssub.s32 256, 256
          %121 = vsyncadd [#allocation5], %s120
          %s122 = sshll.u32 [#allocation4], 4
          %s123 = int_to_ptr.vmem [resolvable:$true] %s122
          %128 = dma.hbm_to_vmem [thread:$0]  %s1, 256, %s123, [#allocation5], 64, 64, 4
        $region16: #{tpu_custom_call.1} parent=11 // pred_fallthru
          _
      $region12: #{tpu_custom_call.1} parent=5 // pred_fallthru
        _
      %p129 = scmp.lt.s32.totalorder %s12, 2
      // Predicated region
      $region17: #{tpu_custom_call.1} parent=5 // pred_check
        %p130 = pneg %p129
      $region18: #{tpu_custom_call.1} parent=5 // pred_check_branch
        %132 = sbr.rel (%p130) target = $region20
      $region19: #{tpu_custom_call.1} parent=5 // pred_region
        // Predicated region
        $region21: #{tpu_custom_call.1} parent=19 // pred_check
          %p133 = pneg %p46
        $region22: #{tpu_custom_call.1} parent=19 // pred_check_branch
          %135 = sbr.rel (%p133) target = $region24
        $region23: #{tpu_custom_call.1} parent=19 // pred_region
          %s136 = sand.u32 %s36, 1
          %s137 = scalar_lea.sflag [#allocation3], %s136
          %s138 = sand.u32 %s36, 1
          %s139 = smul.addr %s138, 8
          %s140 = scalar_lea.vmem [#allocation2], %s139
          %s142 = ssub.s32 128, 128
          %143 = vsyncadd %s137, %s142
          %s144 = sadd.s32 %s20, %s19
          %s145 = smul.addr %s144, 128
          %s146 = scalar_lea.hbm %s0, %s145
          %s148 = sshll.u32 %s140, 4
          %s149 = int_to_ptr.vmem [resolvable:$true] %s148
          %151 = dma.hbm_to_vmem [thread:$0]  %s146, 128, %s149, %s137
        $region24: #{tpu_custom_call.1} parent=19 // pred_fallthru
          _
      $region20: #{tpu_custom_call.1} parent=5 // pred_fallthru
        _
      %p152 = scmp.le.s32.totalorder 1, %s12
      %p153 = scmp.lt.s32.totalorder %s12, 3
      %p154 = pnand %p152, %p153
      %p155 = pneg %p154
      // Predicated region
      $region25: #{tpu_custom_call.1} parent=5 // pred_check
        _
      $region26: #{tpu_custom_call.1} parent=5 // pred_check_branch
        %157 = sbr.rel (%p154) target = $region28
      $region27: #{tpu_custom_call.1} parent=5 // pred_region
        %s158 = ssub.s32 %s12, 1
        %s159 = sand.u32 %s39, 1
        %s160 = scalar_lea.sflag [#allocation3], %s159
        %s161 = sand.u32 %s39, 1
        %s162 = smul.addr %s161, 8
        %s163 = scalar_lea.vmem [#allocation2], %s162
        // Predicated region
        $region29: #{tpu_custom_call.1} parent=27 // pred_check
          %p164 = pneg %p52
        $region30: #{tpu_custom_call.1} parent=27 // pred_check_branch
          %166 = sbr.rel (%p164) target = $region32
        $region31: #{tpu_custom_call.1} parent=27 // pred_region
          %167 = dma.done %s160, 128
        $region32: #{tpu_custom_call.1} parent=27 // pred_fallthru
          _
        // Predicated region
        $region33: #{tpu_custom_call.1} parent=27 // pred_check
          %p168 = pneg %p73
        $region34: #{tpu_custom_call.1} parent=27 // pred_check_branch
          %170 = sbr.rel (%p168) target = $region36
        $region35: #{tpu_custom_call.1} parent=27 // pred_region
          %171 = dma.done [#allocation5], 256
        $region36: #{tpu_custom_call.1} parent=27 // pred_fallthru
          _
        %s172 = sand.u32 %s39, 1
        %s173 = scalar_lea.sflag [#allocation3], %s172
        %s174 = sand.u32 %s39, 1
        %s175 = smul.addr %s174, 8
        %s176 = scalar_lea.vmem [#allocation2], %s175
        %p177 = pneg %p52
        %p178 = pneg %p49
        %p179 = pneg %p73
        %p180 = pneg %p70
        %p181 = pneg %p101
        %p182 = pneg %p98
        %p183 = scmp.lt.s32.totalorder %s21, 1
        %s184 = scalar_select %p183, %s21, 1
        %p185 = scmp.lt.s32.totalorder %s22, 0
        %s186 = scalar_select %p185, %s22, 0
        %s187 = smul.addr %s184, 12
        %s188 = sadd.s32 %s186, %s187
        %s189 = smul.addr %s188, 4
        %s190 = scalar_lea.vmem %s2, %s189
        %p191 = scmp.lt.s32.totalorder %s21, 1
        %s192 = scalar_select %p191, %s21, 1
        %p193 = scmp.lt.s32.totalorder %s22, 0
        %s194 = scalar_select %p193, %s22, 0
        %s195 = smul.addr %s192, 12
        %s196 = sadd.s32 %s194, %s195
        %s197 = smul.addr %s196, 4
        %s198 = scalar_lea.vmem %s2, %s197
        %v200 = vld [vmem:[%s163] sm:$0xff]
        %v201 = vpack.c.bf16 %v200, %v200
        %v202 = vld [vmem:[#allocation4] sm:$0xf]
        %v203 = vld [vmem:[#allocation4 + $0x4] sm:$0xf]
        %v204 = vld [vmem:[#allocation4 + $0x8] sm:$0xf]
        %v205 = vld [vmem:[#allocation4 + $0xc] sm:$0xf]
        %v210 = vunpack.c.l.b16 %v202
        %v211 = vunpack.c.l.b16 %v203
        %v212 = vunpack.c.l.b16 %v204
        %v213 = vunpack.c.l.b16 %v205
        %v214 = vpack.c.b16 %v211, %v210
        %v215 = vpack.c.b16 %v213, %v212
        %vm218 = vcmask 261120
        %v220 = vsel %vm218, %v201, 0
        %222 = vmatprep.subr.bf16.mxu0 0
        %223 = vmatpush1.bf16.msra.mxu0 %v214
        %224 = vmatprep.subr.bf16.mxu0 0
        %225 = vmatpush1.bf16.msra.mxu0 %v215
        %226 = vmatprep.subr.bf16.mxu0 0
        %227 = vmatpush1.bf16.msra.mxu0 0
        %228 = vmatprep.subr.bf16.mxu0 0
        %229 = vmatpush1.bf16.msra.mxu0 0
        %230 = vmatprep.subr.bf16.mxu0 0
        %231 = vmatpush1.bf16.msra.mxu0 0
        %232 = vmatprep.subr.bf16.mxu0 0
        %233 = vmatpush1.bf16.msra.mxu0 0
        %234 = vmatprep.subr.bf16.mxu0 0
        %235 = vmatpush1.bf16.msra.mxu0 0
        %236 = vmatprep.subr.bf16.mxu0 0
        %237 = vmatpush1.bf16.msra.mxu0 0
        %238 = vmatprep.subr.bf16.mxu0 0
        %239 = vmatpush1.bf16.msra.mxu0 0
        %240 = vmatprep.subr.bf16.mxu0 0
        %241 = vmatpush1.bf16.msra.mxu0 0
        %242 = vmatprep.subr.bf16.mxu0 0
        %243 = vmatpush1.bf16.msra.mxu0 0
        %244 = vmatprep.subr.bf16.mxu0 0
        %245 = vmatpush1.bf16.msra.mxu0 0
        %246 = vmatprep.subr.bf16.mxu0 0
        %247 = vmatpush1.bf16.msra.mxu0 0
        %248 = vmatprep.subr.bf16.mxu0 0
        %249 = vmatpush1.bf16.msra.mxu0 0
        %250 = vmatprep.subr.bf16.mxu0 0
        %251 = vmatpush1.bf16.msra.mxu0 0
        %252 = vmatprep.subr.bf16.mxu0 0
        %253 = vmatpush1.bf16.msra.mxu0 0
        %254 = vmatprep.mubr.bf16.mxu0 0
        %255 = vmatmul.mubr.bf16.gmra.mrb[0].mxu0 %v220
        %v256 = vpop.f32.mrb[0].mxu0
        %v257 = vadd.f32 0.0, %v256
        %v258 = vpop.f32.mrb[0].mxu0
        %v259 = vpop.f32.mrb[0].mxu0
        %v260 = vpop.f32.mrb[0].mxu0
        %261 = vdwg.mxu0
        %v262 = vpack.c.bf16 %v257, %v257
        %vm263 = vcmask 60416
        %264 = vst.msk [vmem:[%s198] sm:$0xf] %vm263, %v262
        %v266 = vunpack.c.l.b16 %v262
        %v267 = vpack.c.b16 %v266, %v266
        %268 = vrot.lane.b32.xlu0 %v267, 120
        %v269 = vpop.permute.xlu0 %268
        %s271 = scalar_lea.vmem %s198, 4
        %272 = vst.msk [vmem:[%s271] sm:$0xf] %vm263, %v269
        %273 = vrot.lane.b32.xlu0 %v267, 112
        %v274 = vpop.permute.xlu0 %273
        %s276 = scalar_lea.vmem %s198, 8
        %277 = vst.msk [vmem:[%s276] sm:$0xf] %vm263, %v274
        %278 = vrot.lane.b32.xlu0 %v267, 104
        %v279 = vpop.permute.xlu0 %278
        %s281 = scalar_lea.vmem %s198, 12
        %282 = vst.msk [vmem:[%s281] sm:$0xf] %vm263, %v279
        %v283 = vmul.f32 %v257, 0.35355338
        %v284 = vpack.c.bf16 %v283, %v283
        %v286 = vunpack.c.l.b16 %v284
        %v287 = vpack.c.b16 %v286, %v286
        %288 = vrot.lane.b32.xlu0 %v287, 96
        %v289 = vpop.permute.xlu0 %288
        %s291 = scalar_lea.vmem %s198, 16
        %292 = vst.msk [vmem:[%s291] sm:$0xf] %vm263, %v289
        %293 = vrot.lane.b32.xlu0 %v287, 88
        %v294 = vpop.permute.xlu0 %293
        %s296 = scalar_lea.vmem %s198, 20
        %297 = vst.msk [vmem:[%s296] sm:$0xf] %vm263, %v294
        %298 = vrot.lane.b32.xlu0 %v287, 80
        %v299 = vpop.permute.xlu0 %298
        %s301 = scalar_lea.vmem %s198, 24
        %302 = vst.msk [vmem:[%s301] sm:$0xf] %vm263, %v299
        %303 = vrot.lane.b32.xlu0 %v287, 72
        %v304 = vpop.permute.xlu0 %303
        %s306 = scalar_lea.vmem %s198, 28
        %307 = vst.msk [vmem:[%s306] sm:$0xf] %vm263, %v304
        %308 = vrot.lane.b32.xlu0 %v267, 64
        %v309 = vpop.permute.xlu0 %308
        %s311 = scalar_lea.vmem %s198, 32
        %312 = vst.msk [vmem:[%s311] sm:$0xf] %vm263, %v309
        %313 = vrot.lane.b32.xlu0 %v267, 56
        %v314 = vpop.permute.xlu0 %313
        %s316 = scalar_lea.vmem %s198, 36
        %317 = vst.msk [vmem:[%s316] sm:$0xf] %vm263, %v314
        %318 = vrot.lane.b32.xlu0 %v267, 48
        %v319 = vpop.permute.xlu0 %318
        %s321 = scalar_lea.vmem %s198, 40
        %322 = vst.msk [vmem:[%s321] sm:$0xf] %vm263, %v319
        %323 = vrot.lane.b32.xlu0 %v267, 40
        %v324 = vpop.permute.xlu0 %323
        %s326 = scalar_lea.vmem %s198, 44
        %327 = vst.msk [vmem:[%s326] sm:$0xf] %vm263, %v324
        %p328 = scmp.lt.s32.totalorder %s21, 1
        %s329 = scalar_select %p328, %s21, 1
        %p330 = scmp.lt.s32.totalorder %s22, 0
        %s331 = scalar_select %p330, %s22, 0
        %s332 = smul.addr %s329, 12
        %s333 = sadd.s32 %s331, %s332
        %s334 = smul.addr %s333, 4
        %s335 = scalar_lea.vmem %s2, %s334
        // Predicated region
        $region37: #{tpu_custom_call.1} parent=27 // pred_check
          %p336 = pneg %p98
        $region38: #{tpu_custom_call.1} parent=27 // pred_check_branch
          %338 = sbr.rel (%p336) target = $region40
        $region39: #{tpu_custom_call.1} parent=27 // pred_region
          _
        $region40: #{tpu_custom_call.1} parent=27 // pred_fallthru
          _
      $region28: #{tpu_custom_call.1} parent=5 // pred_fallthru
        _
      %p339 = scmp.le.s32.totalorder 2, %s12
      // Predicated region
      $region41: #{tpu_custom_call.1} parent=5 // pred_check
        %p340 = pneg %p339
      $region42: #{tpu_custom_call.1} parent=5 // pred_check_branch
        %342 = sbr.rel (%p340) target = $region44
      $region43: #{tpu_custom_call.1} parent=5 // pred_region
        %s343 = ssub.s32 %s12, 2
        // Predicated region
        $region45: #{tpu_custom_call.1} parent=43 // pred_check
          %p344 = pneg %p104
        $region46: #{tpu_custom_call.1} parent=43 // pred_check_branch
          %346 = sbr.rel (%p344) target = $region48
        $region47: #{tpu_custom_call.1} parent=43 // pred_region
          %p347 = scmp.lt.s32.totalorder %s23, 1
          %s348 = scalar_select %p347, %s23, 1
          %p349 = scmp.lt.s32.totalorder %s24, 0
          %s350 = scalar_select %p349, %s24, 0
          %s351 = smul.addr %s348, 12
          %s352 = sadd.s32 %s350, %s351
          %s353 = smul.addr %s352, 4
          %s354 = scalar_lea.vmem %s2, %s353
        $region48: #{tpu_custom_call.1} parent=43 // pred_fallthru
          _
      $region44: #{tpu_custom_call.1} parent=5 // pred_fallthru
        _
    $region6: #{tpu_custom_call.1} parent=1 // loop_footer
      %s16 = sadd.s32 1, %s12
    $region7: #{tpu_custom_call.1} parent=1 // loop_footer_branch
      %11 = sbr.rel target = $region3
    $region8: #{tpu_custom_call.1} parent=1 // loop_exit
      _
    %355 = vsyncpa [#allocation3], 1
    %s356 = scalar_lea.sflag [#allocation3], 1
    %357 = vsyncpa %s356, 1
    %358 = vsyncpa [#allocation5], 1

</llo_original>
